<compile_context>
chip_gen: v6e
topology: v6e:2x2x1
jax: 0.10.0
libtpu: 0.0.40
codegen_flags: <defaults>
</compile_context>

<pallas_src>
import functools
import math

import jax
import jax.numpy as jnp
from jax import lax
from jax.experimental import pallas as pl
from jax.experimental.pallas import tpu as pltpu


LN_EPS = 1e-5  # nn.LayerNorm default


def _task_decoder_kernel(x_ref, w1_ref, b1_ref, g_ref, beta_ref,
                         w2_ref, b2_ref, o_ref, *, approximate_gelu):
    # x_ref: (tm, E_pad) bf16 tile of tokens; weights fully resident in VMEM.

    # --- Dropout(p): identity in eval mode ---
    # TODO(synk): training-mode dropout (Bernoulli mask via pltpu.prng_*) not emitted.

    # --- Linear(embedding_dim -> hidden_dim) on the MXU (bf16 in, f32 acc) ---
    h = jnp.dot(x_ref[...], w1_ref[...], preferred_element_type=jnp.float32)
    h = h + b1_ref[...]

    # --- GELU ---
    if approximate_gelu:
        # tanh approximation (EUP) -- optional for v5e where erf's VALU
        # polynomial can be the saturated slot. Slightly different numerics.
        h = jax.nn.gelu(h, approximate=True)
    else:
        # exact erf formulation, matching nn.GELU default
        h = 0.5 * h * (1.0 + lax.erf(h * (1.0 / math.sqrt(2.0))))

    # --- LayerNorm over the hidden (last) dim, f32 ---
    mean = jnp.mean(h, axis=-1, keepdims=True)
    var = jnp.mean(jnp.square(h - mean), axis=-1, keepdims=True)
    h = (h - mean) * lax.rsqrt(var + LN_EPS)
    h = h * g_ref[...] + beta_ref[...]

    # --- Dropout(p): identity in eval mode ---

    # --- Linear(hidden_dim -> output_dim) + Sigmoid (bf16 in, f32 acc) ---
    out = jnp.dot(h.astype(jnp.bfloat16), w2_ref[...],
                  preferred_element_type=jnp.float32) + b2_ref[...]
    o_ref[...] = jax.nn.sigmoid(out).astype(o_ref.dtype)


def _round_up(n, m):
    return ((n + m - 1) // m) * m


def task_decoder(x, params, *, tm=None, approximate_gelu=False):
    """x: (B, S, E) float32. Returns (B, S, O) float32."""
    w1, b1, gamma, beta, w2, b2 = (
        params["w1"], params["b1"], params["gamma"],
        params["beta"], params["w2"], params["b2"],
    )
    B, S, E = x.shape
    H = w1.shape[1]
    O = w2.shape[1]
    N = B * S

    # --- lane-dense padding (E, O -> multiple of 128); H left untouched so
    #     LayerNorm statistics need no adjustment ---
    E_pad = _round_up(E, 128)
    O_pad = _round_up(O, 128)

    # --- adaptive row tile: fit a ~40 MiB VMEM budget (v7x-safe), keep tm a
    #     multiple of 8 (f32 sublane) and keep >= 2 grid steps when possible ---
    if tm is None:
        budget = 40 * 1024 * 1024
        # weights/biases, double-buffered by the pipeline
        fixed = 2 * (E_pad * H * 2 + H * O_pad * 2) + 2 * 4 * (3 * H + O_pad)
        # per-row: x tile (bf16, dbuf) + out tile (f32, dbuf) + f32 intermediates
        per_row = 2 * E_pad * 2 + 2 * O_pad * 4 + 4 * H * 4
        tm = 512
        while tm > 8 and fixed + tm * per_row > budget:
            tm //= 2
        tm = max(tm, 8)
    if N >= 16:
        # keep at least 2 grid steps so v7x's two TensorCores both get work
        max_tm = max(8, ((_round_up(N, 16) // 2) // 8) * 8)
        tm = min(tm, max_tm)
    tm = max(8, (tm // 8) * 8)

    N_pad = _round_up(N, tm)

    # --- build padded, dtype-cast operands (HBM-side, one-time cost) ---
    x2d = x.reshape(N, E).astype(jnp.bfloat16)
    if N_pad != N or E_pad != E:
        x2d = jnp.pad(x2d, ((0, N_pad - N), (0, E_pad - E)))
    w1_p = jnp.pad(w1, ((0, E_pad - E), (0, 0))).astype(jnp.bfloat16)
    w2_p = jnp.pad(w2, ((0, 0), (0, O_pad - O))).astype(jnp.bfloat16)
    b1_2d = b1.reshape(1, H).astype(jnp.float32)
    g_2d = gamma.reshape(1, H).astype(jnp.float32)
    beta_2d = beta.reshape(1, H).astype(jnp.float32)
    b2_2d = jnp.pad(b2, ((0, O_pad - O),)).reshape(1, O_pad).astype(jnp.float32)

    grid = (N_pad // tm,)

    cost = pl.CostEstimate(
        flops=2 * N_pad * E_pad * H + 2 * N_pad * H * O_pad,
        transcendentals=N_pad * H + N_pad * O_pad,
        bytes_accessed=(N_pad * E_pad * 2 + E_pad * H * 2 + H * O_pad * 2
                        + N_pad * O_pad * 4 + 4 * (3 * H + O_pad)),
    )

    kernel = functools.partial(_task_decoder_kernel,
                               approximate_gelu=approximate_gelu)

    out2d = pl.pallas_call(
        kernel,
        out_shape=jax.ShapeDtypeStruct((N_pad, O_pad), jnp.float32),
        grid_spec=pltpu.PrefetchScalarGridSpec(
            num_scalar_prefetch=0,
            grid=grid,
            in_specs=[
                pl.BlockSpec((tm, E_pad), lambda i: (i, 0)),   # x tile (bf16)
                pl.BlockSpec((E_pad, H), lambda i: (0, 0)),    # w1 (bf16, full)
                pl.BlockSpec((1, H), lambda i: (0, 0)),        # b1
                pl.BlockSpec((1, H), lambda i: (0, 0)),        # ln gamma
                pl.BlockSpec((1, H), lambda i: (0, 0)),        # ln beta
                pl.BlockSpec((H, O_pad), lambda i: (0, 0)),    # w2 (bf16, full)
                pl.BlockSpec((1, O_pad), lambda i: (0, 0)),    # b2
            ],
            out_specs=pl.BlockSpec((tm, O_pad), lambda i: (i, 0)),
        ),
        compiler_params=pltpu.CompilerParams(
            dimension_semantics=("parallel",),
            vmem_limit_bytes=48 * 1024 * 1024,
        ),
        cost_estimate=cost,
    )(x2d, w1_p, b1_2d, g_2d, beta_2d, w2_p, b2_2d)

    return out2d[:N, :O].reshape(B, S, O)


def init_params(key, embedding_dim, hidden_dim, output_dim):
    k1, k2, k3, k4 = jax.random.split(key, 4)
    # deterministic small-scale init (synthetic weights, not a checkpoint)
    lim1 = 1.0 / math.sqrt(embedding_dim)
    lim2 = 1.0 / math.sqrt(hidden_dim)
    return {
        "w1": jax.random.uniform(k1, (embedding_dim, hidden_dim),
                                 jnp.float32, -lim1, lim1),
        "b1": jax.random.uniform(k2, (hidden_dim,), jnp.float32, -lim1, lim1),
        "gamma": jnp.ones((hidden_dim,), jnp.float32),
        "beta": jnp.zeros((hidden_dim,), jnp.float32),
        "w2": jax.random.uniform(k3, (hidden_dim, output_dim),
                                 jnp.float32, -lim2, lim2),
        "b2": jax.random.uniform(k4, (output_dim,), jnp.float32, -lim2, lim2),
    }


def _reference(x, p):
    # pure-JAX f32 reference for a sanity check
    h = x @ p["w1"] + p["b1"]
    h = 0.5 * h * (1.0 + lax.erf(h / math.sqrt(2.0)))
    mean = h.mean(-1, keepdims=True)
    var = ((h - mean) ** 2).mean(-1, keepdims=True)
    h = (h - mean) * lax.rsqrt(var + LN_EPS) * p["gamma"] + p["beta"]
    return jax.nn.sigmoid(h @ p["w2"] + p["b2"])


if __name__ == "__main__":
    B, S, E, H, O = 2, 8, 32, 64, 16
    key = jax.random.PRNGKey(0)
    kx, kp = jax.random.split(key)
    x = jax.random.normal(kx, (B, S, E), jnp.float32)
    params = init_params(kp, E, H, O)

    out = task_decoder(x, params)
    jax.block_until_ready(out)

    ref = _reference(x, params)
    assert out.shape == (B, S, O)
    # bf16 MXU inputs with f32 accumulation vs. pure-f32 reference
    assert jnp.allclose(out, ref, atol=3e-2, rtol=3e-2)
    print("KERNEL_OK")
</pallas_src>

<mosaic_0001>
module attributes {stable_mosaic.version = 11 : i64} {
  func.func @_task_decoder_kernel(%arg0: i32, %arg1: memref<8x128xbf16, #tpu.memory_space<vmem>>, %arg2: memref<128x64xbf16, #tpu.memory_space<vmem>>, %arg3: memref<1x64xf32, #tpu.memory_space<vmem>>, %arg4: memref<1x64xf32, #tpu.memory_space<vmem>>, %arg5: memref<1x64xf32, #tpu.memory_space<vmem>>, %arg6: memref<64x128xbf16, #tpu.memory_space<vmem>>, %arg7: memref<1x128xf32, #tpu.memory_space<vmem>>, %arg8: memref<8x128xf32, #tpu.memory_space<vmem>>) attributes {dimension_semantics = [#tpu.dimension_semantics<parallel>], iteration_bounds = array<i64: 2>, scalar_prefetch = 0 : i64, scratch_operands = 0 : i64, tpu.core_type = #tpu.core_type<tc>, window_params = [{transform_indices = @transform_0, window_bounds = array<i64: 8, 128>}, {pipeline_mode = #tpu.pipeline_mode<synchronous>, transform_indices = @transform_1, window_bounds = array<i64: 128, 64>}, {pipeline_mode = #tpu.pipeline_mode<synchronous>, transform_indices = @transform_2, window_bounds = array<i64: 1, 64>}, {pipeline_mode = #tpu.pipeline_mode<synchronous>, transform_indices = @transform_3, window_bounds = array<i64: 1, 64>}, {pipeline_mode = #tpu.pipeline_mode<synchronous>, transform_indices = @transform_4, window_bounds = array<i64: 1, 64>}, {pipeline_mode = #tpu.pipeline_mode<synchronous>, transform_indices = @transform_5, window_bounds = array<i64: 64, 128>}, {pipeline_mode = #tpu.pipeline_mode<synchronous>, transform_indices = @transform_6, window_bounds = array<i64: 1, 128>}, {transform_indices = @transform_7, window_bounds = array<i64: 8, 128>}]} {
    %c0 = arith.constant 0 : index
    %c0_0 = arith.constant 0 : index
    %0 = vector.load %arg1[%c0, %c0_0] : memref<8x128xbf16, #tpu.memory_space<vmem>>, vector<8x128xbf16>
    %c0_1 = arith.constant 0 : index
    %c0_2 = arith.constant 0 : index
    %1 = vector.load %arg2[%c0_1, %c0_2] : memref<128x64xbf16, #tpu.memory_space<vmem>>, vector<128x64xbf16>
    %cst = arith.constant dense<0.000000e+00> : vector<8x64xf32>
    %2 = tpu.matmul %0, %1, %cst {dimension_numbers = #tpu.dot_dimension_numbers<[1], [0], [0], [1], [0, 0, 1, 1], [], []>} : vector<8x128xbf16>, vector<128x64xbf16>, vector<8x64xf32> -> vector<8x64xf32>
    %c0_3 = arith.constant 0 : index
    %c0_4 = arith.constant 0 : index
    %3 = vector.load %arg3[%c0_3, %c0_4] : memref<1x64xf32, #tpu.memory_space<vmem>>, vector<1x64xf32>
    %4 = vector.broadcast %3 : vector<1x64xf32> to vector<8x64xf32>
    %5 = arith.addf %2, %4 : vector<8x64xf32>
    %cst_5 = arith.constant 5.000000e-01 : f32
    %6 = vector.broadcast %cst_5 : f32 to vector<8x64xf32>
    %7 = arith.mulf %6, %5 : vector<8x64xf32>
    %cst_6 = arith.constant 0.707106769 : f32
    %8 = vector.broadcast %cst_6 : f32 to vector<8x64xf32>
    %9 = arith.mulf %5, %8 : vector<8x64xf32>
    %10 = math.erf %9 : vector<8x64xf32>
    %cst_7 = arith.constant 1.000000e+00 : f32
    %11 = vector.broadcast %cst_7 : f32 to vector<8x64xf32>
    %12 = arith.addf %11, %10 : vector<8x64xf32>
    %13 = arith.mulf %7, %12 : vector<8x64xf32>
    %cst_8 = arith.constant dense<0.000000e+00> : vector<8xf32>
    %14 = vector.multi_reduction <add>, %13, %cst_8 [1] : vector<8x64xf32> to vector<8xf32>
    %15 = vector.shape_cast %14 : vector<8xf32> to vector<8x1xf32>
    %cst_9 = arith.constant 6.400000e+01 : f32
    %16 = vector.broadcast %cst_9 : f32 to vector<8x1xf32>
    %17 = arith.divf %15, %16 : vector<8x1xf32>
    %18 = vector.broadcast %17 : vector<8x1xf32> to vector<8x64xf32>
    %19 = arith.subf %13, %18 : vector<8x64xf32>
    %20 = arith.mulf %19, %19 : vector<8x64xf32>
    %cst_10 = arith.constant dense<0.000000e+00> : vector<8xf32>
    %21 = vector.multi_reduction <add>, %20, %cst_10 [1] : vector<8x64xf32> to vector<8xf32>
    %22 = vector.shape_cast %21 : vector<8xf32> to vector<8x1xf32>
    %cst_11 = arith.constant 6.400000e+01 : f32
    %23 = vector.broadcast %cst_11 : f32 to vector<8x1xf32>
    %24 = arith.divf %22, %23 : vector<8x1xf32>
    %25 = vector.broadcast %17 : vector<8x1xf32> to vector<8x64xf32>
    %26 = arith.subf %13, %25 : vector<8x64xf32>
    %cst_12 = arith.constant 9.99999974E-6 : f32
    %27 = vector.broadcast %cst_12 : f32 to vector<8x1xf32>
    %28 = arith.addf %24, %27 : vector<8x1xf32>
    %29 = math.rsqrt %28 : vector<8x1xf32>
    %30 = vector.broadcast %29 : vector<8x1xf32> to vector<8x64xf32>
    %31 = arith.mulf %26, %30 : vector<8x64xf32>
    %c0_13 = arith.constant 0 : index
    %c0_14 = arith.constant 0 : index
    %32 = vector.load %arg4[%c0_13, %c0_14] : memref<1x64xf32, #tpu.memory_space<vmem>>, vector<1x64xf32>
    %33 = vector.broadcast %32 : vector<1x64xf32> to vector<8x64xf32>
    %34 = arith.mulf %31, %33 : vector<8x64xf32>
    %c0_15 = arith.constant 0 : index
    %c0_16 = arith.constant 0 : index
    %35 = vector.load %arg5[%c0_15, %c0_16] : memref<1x64xf32, #tpu.memory_space<vmem>>, vector<1x64xf32>
    %36 = vector.broadcast %35 : vector<1x64xf32> to vector<8x64xf32>
    %37 = arith.addf %34, %36 : vector<8x64xf32>
    %38 = arith.truncf %37 : vector<8x64xf32> to vector<8x64xbf16>
    %c0_17 = arith.constant 0 : index
    %c0_18 = arith.constant 0 : index
    %39 = vector.load %arg6[%c0_17, %c0_18] : memref<64x128xbf16, #tpu.memory_space<vmem>>, vector<64x128xbf16>
    %cst_19 = arith.constant dense<0.000000e+00> : vector<8x128xf32>
    %40 = tpu.matmul %38, %39, %cst_19 {dimension_numbers = #tpu.dot_dimension_numbers<[1], [0], [0], [1], [0, 0, 1, 1], [], []>} : vector<8x64xbf16>, vector<64x128xbf16>, vector<8x128xf32> -> vector<8x128xf32>
    %c0_20 = arith.constant 0 : index
    %c0_21 = arith.constant 0 : index
    %41 = vector.load %arg7[%c0_20, %c0_21] : memref<1x128xf32, #tpu.memory_space<vmem>>, vector<1x128xf32>
    %42 = vector.broadcast %41 : vector<1x128xf32> to vector<8x128xf32>
    %43 = arith.addf %40, %42 : vector<8x128xf32>
    %44 = arith.negf %43 : vector<8x128xf32>
    %45 = math.exp %44 : vector<8x128xf32>
    %cst_22 = arith.constant 1.000000e+00 : f32
    %46 = vector.broadcast %cst_22 : f32 to vector<8x128xf32>
    %47 = arith.addf %46, %45 : vector<8x128xf32>
    %48 = arith.divf %46, %47 : vector<8x128xf32>
    %c0_23 = arith.constant 0 : index
    %c0_24 = arith.constant 0 : index
    %49 = vector.load %arg8[%c0_23, %c0_24] : memref<8x128xf32, #tpu.memory_space<vmem>>, vector<8x128xf32>
    tpu.vector_store %arg8[%c0_23, %c0_24], %48 {strides = array<i32>} : memref<8x128xf32, #tpu.memory_space<vmem>>, vector<8x128xf32>,
    return
  }
  func.func @transform_0(%arg0: i32) -> (i32, i32) {
    %c0_i32 = arith.constant 0 : i32
    %c0_i32_0 = arith.constant 0 : i32
    return %arg0, %c0_i32 : i32, i32
  }
  func.func @transform_1(%arg0: i32) -> (i32, i32) {
    %c0_i32 = arith.constant 0 : i32
    %c0_i32_0 = arith.constant 0 : i32
    %c0_i32_1 = arith.constant 0 : i32
    return %c0_i32, %c0_i32_0 : i32, i32
  }
  func.func @transform_2(%arg0: i32) -> (i32, i32) {
    %c0_i32 = arith.constant 0 : i32
    %c0_i32_0 = arith.constant 0 : i32
    %c0_i32_1 = arith.constant 0 : i32
    return %c0_i32, %c0_i32_0 : i32, i32
  }
  func.func @transform_3(%arg0: i32) -> (i32, i32) {
    %c0_i32 = arith.constant 0 : i32
    %c0_i32_0 = arith.constant 0 : i32
    %c0_i32_1 = arith.constant 0 : i32
    return %c0_i32, %c0_i32_0 : i32, i32
  }
  func.func @transform_4(%arg0: i32) -> (i32, i32) {
    %c0_i32 = arith.constant 0 : i32
    %c0_i32_0 = arith.constant 0 : i32
    %c0_i32_1 = arith.constant 0 : i32
    return %c0_i32, %c0_i32_0 : i32, i32
  }
  func.func @transform_5(%arg0: i32) -> (i32, i32) {
    %c0_i32 = arith.constant 0 : i32
    %c0_i32_0 = arith.constant 0 : i32
    %c0_i32_1 = arith.constant 0 : i32
    return %c0_i32, %c0_i32_0 : i32, i32
  }
  func.func @transform_6(%arg0: i32) -> (i32, i32) {
    %c0_i32 = arith.constant 0 : i32
    %c0_i32_0 = arith.constant 0 : i32
    %c0_i32_1 = arith.constant 0 : i32
    return %c0_i32, %c0_i32_0 : i32, i32
  }
  func.func @transform_7(%arg0: i32) -> (i32, i32) {
    %c0_i32 = arith.constant 0 : i32
    %c0_i32_0 = arith.constant 0 : i32
    return %arg0, %c0_i32 : i32, i32
  }
}

</mosaic_0001>

<llo_original>
// kernel: tpu_custom_call.1
$region0: #{tpu_custom_call.1}
  #allocation0 [shape = 'u32[]', space=smem, size = 0x4, offset = 0x4, fixed_abs, tag = 'smem constant byte address 0x4 - core index']
  #allocation1 [shape = 'u32[144,128]{1,0:T(1,128)}', space=vmem, size = 0x12000, scoped, tag = 'internal scratch']
  %s0 = inlined_call_operand.vmem [shape: bf16[16,128], index: 0, kind: input, shape index: {}]
  %s1 = inlined_call_operand.vmem [shape: bf16[128,64], index: 1, kind: input, shape index: {}]
  %s2 = inlined_call_operand.vmem [shape: f32[1,64], index: 2, kind: input, shape index: {}]
  %s3 = inlined_call_operand.vmem [shape: f32[1,64], index: 3, kind: input, shape index: {}]
  %s4 = inlined_call_operand.vmem [shape: f32[1,64], index: 4, kind: input, shape index: {}]
  %s5 = inlined_call_operand.vmem [shape: bf16[64,128], index: 5, kind: input, shape index: {}]
  %s6 = inlined_call_operand.vmem [shape: f32[1,128], index: 6, kind: input, shape index: {}]
  %s7 = inlined_call_operand.hbm [shape: f32[16,128], index: 7, kind: output, shape index: {}]
  %s8 = sld [smem:[#allocation0]]
  $region61: #{tpu_custom_call.1} parent=0
    _
  %s10 = ssub.s32 1, %s8
  %s11 = scalar_select 0, %s10, %s8
  $region1: #{tpu_custom_call.1} parent=0
    #allocation2 [shape = 'u8[8192]{0}', space=vmem, size = 0x2000, scoped, tag = 'output window, operand 0']
    #allocation3 [shape = 's32[2]{0}', space=sflag, size = 0x8, scoped, tag = 'scoped memory for tpu_custom_call.1']
    %12 = vsyncpa [#allocation3], 0
    %s13 = scalar_lea.sflag [#allocation3], 1
    %14 = vsyncpa %s13, 0
    loop: start=0, step=1, limit=4
    $region2: #{tpu_custom_call.1} parent=1 // loop_pre_header
      _
    $region3: #{tpu_custom_call.1} parent=1 // loop_header
      %s16 = sphi 0, %s20
      %p17 = scmp.ge.s32.totalorder %s16, 4
      %s26 = sphi 0, %s28
      %s29 = sphi 0, %s26
      %s30 = sphi 0, %s29
      %s46 = sphi 0, %s30
      %s50 = sphi 0, %s50
      %s52 = sphi 0, %s50
      %s53 = sphi 0, %s52
      %s67 = sphi 0, %s53
      %s71 = sphi 0, %s71
      %s73 = sphi 0, %s71
      %s74 = sphi 0, %s73
      %s88 = sphi 0, %s74
      %s92 = sphi 0, %s92
      %s94 = sphi 0, %s92
      %s95 = sphi 0, %s94
      %s109 = sphi 0, %s95
      %s113 = sphi 0, %s113
      %s115 = sphi 0, %s113
      %s116 = sphi 0, %s115
      %s130 = sphi 0, %s116
      %s134 = sphi 0, %s134
      %s136 = sphi 0, %s134
      %s137 = sphi 0, %s136
      %s151 = sphi 0, %s137
      %s155 = sphi 0, %s155
      %s157 = sphi 0, %s155
      %s158 = sphi 0, %s157
      %s172 = sphi 0, %s158
      %s178 = sphi 0, %s180
      %s181 = sphi 0, %s178
      %s182 = sphi 0, %s181
      %s198 = sphi 0, %s182
    $region4: #{tpu_custom_call.1} parent=1 // loop_header_branch
      %19 = sbr.rel (%p17) target = $region8
    $region5: #{tpu_custom_call.1} parent=1 // loop_body
      %s21 = ssub.s32 %s16, 1
      %s22 = ssub.s32 %s16, 2
      %s23 = sadd.s32 %s16, 1
      %s24 = ssub.s32 %s16, %s23
      %p25 = scmp.eq.s32.totalorder %s24, 0
      %s27 = sadd.s32 %s26, 1
      %s28 = scalar_select %p25, %s26, %s27
      %p31 = pneg %p25
      %p32 = scmp.eq.s32.totalorder %s16, 1
      %p33 = por %p31, %p32
      %p34 = scmp.ne.s32.totalorder %s26, %s29
      %p35 = scmp.eq.s32.totalorder %s16, 0
      %p36 = por %p34, %p35
      %p37 = scmp.ne.s32.totalorder %s26, %s29
      %p38 = scmp.eq.s32.totalorder %s21, 1
      %p39 = por %p37, %p38
      %p40 = scmp.ne.s32.totalorder %s29, %s30
      %p41 = scmp.eq.s32.totalorder %s21, 0
      %p42 = por %p40, %p41
      %p43 = scmp.ne.s32.totalorder %s29, %s30
      %p44 = scmp.eq.s32.totalorder %s22, 1
      %p45 = por %p43, %p44
      %p47 = scmp.ne.s32.totalorder %s30, %s46
      %p48 = scmp.eq.s32.totalorder %s22, 0
      %p49 = por %p47, %p48
      %s51 = sadd.s32 %s50, 1
      %p54 = scmp.eq.s32.totalorder %s16, 1
      %p55 = scmp.ne.s32.totalorder %s50, %s52
      %p56 = scmp.eq.s32.totalorder %s16, 0
      %p57 = por %p55, %p56
      %p58 = scmp.ne.s32.totalorder %s50, %s52
      %p59 = scmp.eq.s32.totalorder %s21, 1
      %p60 = por %p58, %p59
      %p61 = scmp.ne.s32.totalorder %s52, %s53
      %p62 = scmp.eq.s32.totalorder %s21, 0
      %p63 = por %p61, %p62
      %p64 = scmp.ne.s32.totalorder %s52, %s53
      %p65 = scmp.eq.s32.totalorder %s22, 1
      %p66 = por %p64, %p65
      %p68 = scmp.ne.s32.totalorder %s53, %s67
      %p69 = scmp.eq.s32.totalorder %s22, 0
      %p70 = por %p68, %p69
      %s72 = sadd.s32 %s71, 1
      %p75 = scmp.eq.s32.totalorder %s16, 1
      %p76 = scmp.ne.s32.totalorder %s71, %s73
      %p77 = scmp.eq.s32.totalorder %s16, 0
      %p78 = por %p76, %p77
      %p79 = scmp.ne.s32.totalorder %s71, %s73
      %p80 = scmp.eq.s32.totalorder %s21, 1
      %p81 = por %p79, %p80
      %p82 = scmp.ne.s32.totalorder %s73, %s74
      %p83 = scmp.eq.s32.totalorder %s21, 0
      %p84 = por %p82, %p83
      %p85 = scmp.ne.s32.totalorder %s73, %s74
      %p86 = scmp.eq.s32.totalorder %s22, 1
      %p87 = por %p85, %p86
      %p89 = scmp.ne.s32.totalorder %s74, %s88
      %p90 = scmp.eq.s32.totalorder %s22, 0
      %p91 = por %p89, %p90
      %s93 = sadd.s32 %s92, 1
      %p96 = scmp.eq.s32.totalorder %s16, 1
      %p97 = scmp.ne.s32.totalorder %s92, %s94
      %p98 = scmp.eq.s32.totalorder %s16, 0
      %p99 = por %p97, %p98
      %p100 = scmp.ne.s32.totalorder %s92, %s94
      %p101 = scmp.eq.s32.totalorder %s21, 1
      %p102 = por %p100, %p101
      %p103 = scmp.ne.s32.totalorder %s94, %s95
      %p104 = scmp.eq.s32.totalorder %s21, 0
      %p105 = por %p103, %p104
      %p106 = scmp.ne.s32.totalorder %s94, %s95
      %p107 = scmp.eq.s32.totalorder %s22, 1
      %p108 = por %p106, %p107
      %p110 = scmp.ne.s32.totalorder %s95, %s109
      %p111 = scmp.eq.s32.totalorder %s22, 0
      %p112 = por %p110, %p111
      %s114 = sadd.s32 %s113, 1
      %p117 = scmp.eq.s32.totalorder %s16, 1
      %p118 = scmp.ne.s32.totalorder %s113, %s115
      %p119 = scmp.eq.s32.totalorder %s16, 0
      %p120 = por %p118, %p119
      %p121 = scmp.ne.s32.totalorder %s113, %s115
      %p122 = scmp.eq.s32.totalorder %s21, 1
      %p123 = por %p121, %p122
      %p124 = scmp.ne.s32.totalorder %s115, %s116
      %p125 = scmp.eq.s32.totalorder %s21, 0
      %p126 = por %p124, %p125
      %p127 = scmp.ne.s32.totalorder %s115, %s116
      %p128 = scmp.eq.s32.totalorder %s22, 1
      %p129 = por %p127, %p128
      %p131 = scmp.ne.s32.totalorder %s116, %s130
      %p132 = scmp.eq.s32.totalorder %s22, 0
      %p133 = por %p131, %p132
      %s135 = sadd.s32 %s134, 1
      %p138 = scmp.eq.s32.totalorder %s16, 1
      %p139 = scmp.ne.s32.totalorder %s134, %s136
      %p140 = scmp.eq.s32.totalorder %s16, 0
      %p141 = por %p139, %p140
      %p142 = scmp.ne.s32.totalorder %s134, %s136
      %p143 = scmp.eq.s32.totalorder %s21, 1
      %p144 = por %p142, %p143
      %p145 = scmp.ne.s32.totalorder %s136, %s137
      %p146 = scmp.eq.s32.totalorder %s21, 0
      %p147 = por %p145, %p146
      %p148 = scmp.ne.s32.totalorder %s136, %s137
      %p149 = scmp.eq.s32.totalorder %s22, 1
      %p150 = por %p148, %p149
      %p152 = scmp.ne.s32.totalorder %s137, %s151
      %p153 = scmp.eq.s32.totalorder %s22, 0
      %p154 = por %p152, %p153
      %s156 = sadd.s32 %s155, 1
      %p159 = scmp.eq.s32.totalorder %s16, 1
      %p160 = scmp.ne.s32.totalorder %s155, %s157
      %p161 = scmp.eq.s32.totalorder %s16, 0
      %p162 = por %p160, %p161
      %p163 = scmp.ne.s32.totalorder %s155, %s157
      %p164 = scmp.eq.s32.totalorder %s21, 1
      %p165 = por %p163, %p164
      %p166 = scmp.ne.s32.totalorder %s157, %s158
      %p167 = scmp.eq.s32.totalorder %s21, 0
      %p168 = por %p166, %p167
      %p169 = scmp.ne.s32.totalorder %s157, %s158
      %p170 = scmp.eq.s32.totalorder %s22, 1
      %p171 = por %p169, %p170
      %p173 = scmp.ne.s32.totalorder %s158, %s172
      %p174 = scmp.eq.s32.totalorder %s22, 0
      %p175 = por %p173, %p174
      %s176 = ssub.s32 %s16, %s23
      %p177 = scmp.eq.s32.totalorder %s176, 0
      %s179 = sadd.s32 %s178, 1
      %s180 = scalar_select %p177, %s178, %s179
      %p183 = pneg %p177
      %p184 = scmp.eq.s32.totalorder %s16, 1
      %p185 = por %p183, %p184
      %p186 = scmp.ne.s32.totalorder %s178, %s181
      %p187 = scmp.eq.s32.totalorder %s16, 0
      %p188 = por %p186, %p187
      %p189 = scmp.ne.s32.totalorder %s178, %s181
      %p190 = scmp.eq.s32.totalorder %s21, 1
      %p191 = por %p189, %p190
      %p192 = scmp.ne.s32.totalorder %s181, %s182
      %p193 = scmp.eq.s32.totalorder %s21, 0
      %p194 = por %p192, %p193
      %p195 = scmp.ne.s32.totalorder %s181, %s182
      %p196 = scmp.eq.s32.totalorder %s22, 1
      %p197 = por %p195, %p196
      %p199 = scmp.ne.s32.totalorder %s182, %s198
      %p200 = scmp.eq.s32.totalorder %s22, 0
      %p201 = por %p199, %p200
      %p202 = scmp.le.s32.totalorder 1, %s16
      %p203 = scmp.lt.s32.totalorder %s16, 3
      %p204 = pnand %p202, %p203
      %p205 = pneg %p204
      // Predicated region
      $region9: #{tpu_custom_call.1} parent=5 // pred_check
        _
      $region10: #{tpu_custom_call.1} parent=5 // pred_check_branch
        %207 = sbr.rel (%p204) target = $region12
      $region11: #{tpu_custom_call.1} parent=5 // pred_region
        %s208 = ssub.s32 %s16, 1
        // Predicated region
        $region13: #{tpu_custom_call.1} parent=11 // pred_check
          %p209 = pneg %p63
        $region14: #{tpu_custom_call.1} parent=11 // pred_check_branch
          %211 = sbr.rel (%p209) target = $region16
        $region15: #{tpu_custom_call.1} parent=11 // pred_region
          _
        $region16: #{tpu_custom_call.1} parent=11 // pred_fallthru
          _
        // Predicated region
        $region17: #{tpu_custom_call.1} parent=11 // pred_check
          %p212 = pneg %p84
        $region18: #{tpu_custom_call.1} parent=11 // pred_check_branch
          %214 = sbr.rel (%p212) target = $region20
        $region19: #{tpu_custom_call.1} parent=11 // pred_region
          _
        $region20: #{tpu_custom_call.1} parent=11 // pred_fallthru
          _
        // Predicated region
        $region21: #{tpu_custom_call.1} parent=11 // pred_check
          %p215 = pneg %p105
        $region22: #{tpu_custom_call.1} parent=11 // pred_check_branch
          %217 = sbr.rel (%p215) target = $region24
        $region23: #{tpu_custom_call.1} parent=11 // pred_region
          _
        $region24: #{tpu_custom_call.1} parent=11 // pred_fallthru
          _
        // Predicated region
        $region25: #{tpu_custom_call.1} parent=11 // pred_check
          %p218 = pneg %p126
        $region26: #{tpu_custom_call.1} parent=11 // pred_check_branch
          %220 = sbr.rel (%p218) target = $region28
        $region27: #{tpu_custom_call.1} parent=11 // pred_region
          _
        $region28: #{tpu_custom_call.1} parent=11 // pred_fallthru
          _
        // Predicated region
        $region29: #{tpu_custom_call.1} parent=11 // pred_check
          %p221 = pneg %p147
        $region30: #{tpu_custom_call.1} parent=11 // pred_check_branch
          %223 = sbr.rel (%p221) target = $region32
        $region31: #{tpu_custom_call.1} parent=11 // pred_region
          _
        $region32: #{tpu_custom_call.1} parent=11 // pred_fallthru
          _
        // Predicated region
        $region33: #{tpu_custom_call.1} parent=11 // pred_check
          %p224 = pneg %p168
        $region34: #{tpu_custom_call.1} parent=11 // pred_check_branch
          %226 = sbr.rel (%p224) target = $region36
        $region35: #{tpu_custom_call.1} parent=11 // pred_region
          _
        $region36: #{tpu_custom_call.1} parent=11 // pred_fallthru
          _
      $region12: #{tpu_custom_call.1} parent=5 // pred_fallthru
        _
      %p227 = scmp.lt.s32.totalorder %s16, 2
      // Predicated region
      $region37: #{tpu_custom_call.1} parent=5 // pred_check
        %p228 = pneg %p227
      $region38: #{tpu_custom_call.1} parent=5 // pred_check_branch
        %230 = sbr.rel (%p228) target = $region40
      $region39: #{tpu_custom_call.1} parent=5 // pred_region
        // Predicated region
        $region41: #{tpu_custom_call.1} parent=39 // pred_check
          %p231 = pneg %p36
        $region42: #{tpu_custom_call.1} parent=39 // pred_check_branch
          %233 = sbr.rel (%p231) target = $region44
        $region43: #{tpu_custom_call.1} parent=39 // pred_region
          %p234 = scmp.lt.s32.totalorder %s16, 1
          %s235 = scalar_select %p234, %s16, 1
          %s236 = smul.addr %s235, 4
          %s237 = scalar_lea.vmem %s0, %s236
        $region44: #{tpu_custom_call.1} parent=39 // pred_fallthru
          _
      $region40: #{tpu_custom_call.1} parent=5 // pred_fallthru
        _
      %p238 = scmp.le.s32.totalorder 1, %s16
      %p239 = scmp.lt.s32.totalorder %s16, 3
      %p240 = pnand %p238, %p239
      %p241 = pneg %p240
      // Predicated region
      $region45: #{tpu_custom_call.1} parent=5 // pred_check
        _
      $region46: #{tpu_custom_call.1} parent=5 // pred_check_branch
        %243 = sbr.rel (%p240) target = $region48
      $region47: #{tpu_custom_call.1} parent=5 // pred_region
        %s244 = ssub.s32 %s16, 1
        %p245 = scmp.lt.s32.totalorder %s21, 1
        %s246 = scalar_select %p245, %s21, 1
        %s247 = smul.addr %s246, 4
        %s248 = scalar_lea.vmem %s0, %s247
        %p249 = pneg %p42
        %p250 = pneg %p39
        %p251 = pneg %p63
        %p252 = pneg %p60
        %p253 = pneg %p84
        %p254 = pneg %p81
        %p255 = pneg %p105
        %p256 = pneg %p102
        %p257 = pneg %p126
        %p258 = pneg %p123
        %p259 = pneg %p147
        %p260 = pneg %p144
        %p261 = pneg %p168
        %p262 = pneg %p165
        %p263 = pneg %p194
        %p264 = pneg %p191
        %s265 = sand.u32 %s181, 1
        %s266 = scalar_lea.sflag [#allocation3], %s265
        %s267 = sand.u32 %s181, 1
        %s268 = smul.addr %s267, 8
        %s269 = scalar_lea.vmem [#allocation2], %s268
        %p270 = scmp.lt.s32.totalorder %s21, 1
        %s271 = scalar_select %p270, %s21, 1
        %s272 = smul.addr %s271, 4
        %s273 = scalar_lea.vmem %s0, %s272
        %v275 = vld [vmem:[%s273] sm:$0xf]
        %v276 = vld [vmem:[%s1] sm:$0xf]
        %v277 = vld [vmem:[%s1 + $0x4] sm:$0xf]
        %v278 = vld [vmem:[%s1 + $0x8] sm:$0xf]
        %v279 = vld [vmem:[%s1 + $0xc] sm:$0xf]
        %v280 = vld [vmem:[%s1 + $0x10] sm:$0xf]
        %v281 = vld [vmem:[%s1 + $0x14] sm:$0xf]
        %v282 = vld [vmem:[%s1 + $0x18] sm:$0xf]
        %v283 = vld [vmem:[%s1 + $0x1c] sm:$0xf]
        %v284 = vld [vmem:[%s1 + $0x20] sm:$0xf]
        %v285 = vld [vmem:[%s1 + $0x24] sm:$0xf]
        %v286 = vld [vmem:[%s1 + $0x28] sm:$0xf]
        %v287 = vld [vmem:[%s1 + $0x2c] sm:$0xf]
        %v288 = vld [vmem:[%s1 + $0x30] sm:$0xf]
        %v289 = vld [vmem:[%s1 + $0x34] sm:$0xf]
        %v290 = vld [vmem:[%s1 + $0x38] sm:$0xf]
        %v291 = vld [vmem:[%s1 + $0x3c] sm:$0xf]
        %v292 = vld [vmem:[%s2] sm:$0x1]
        %v294 = vlaneseq
        %v295 = vshrl.u32 %v294, 7
        %v296 = vsub.s32 0, %v295
        %v297 = vrot.slane %v292, %v296
        %v315 = vunpack.c.l.b16 %v276
        %v316 = vunpack.c.l.b16 %v277
        %v317 = vunpack.c.l.b16 %v278
        %v318 = vunpack.c.l.b16 %v279
        %v319 = vunpack.c.l.b16 %v280
        %v320 = vunpack.c.l.b16 %v281
        %v321 = vunpack.c.l.b16 %v282
        %v322 = vunpack.c.l.b16 %v283
        %v323 = vunpack.c.l.b16 %v284
        %v324 = vunpack.c.l.b16 %v285
        %v325 = vunpack.c.l.b16 %v286
        %v326 = vunpack.c.l.b16 %v287
        %v327 = vunpack.c.l.b16 %v288
        %v328 = vunpack.c.l.b16 %v289
        %v329 = vunpack.c.l.b16 %v290
        %v330 = vunpack.c.l.b16 %v291
        %v331 = vpack.c.b16 %v316, %v315
        %v332 = vpack.c.b16 %v318, %v317
        %v333 = vpack.c.b16 %v320, %v319
        %v334 = vpack.c.b16 %v322, %v321
        %v335 = vpack.c.b16 %v324, %v323
        %v336 = vpack.c.b16 %v326, %v325
        %v337 = vpack.c.b16 %v328, %v327
        %v338 = vpack.c.b16 %v330, %v329
        %347 = vmatprep.subr.bf16.mxu0 0
        %348 = vmatpush1.bf16.msra.mxu0 %v338
        %349 = vmatprep.subr.bf16.mxu0 0
        %350 = vmatpush1.bf16.msra.mxu0 %v337
        %351 = vmatprep.subr.bf16.mxu0 0
        %352 = vmatpush1.bf16.msra.mxu0 %v336
        %353 = vmatprep.subr.bf16.mxu0 0
        %354 = vmatpush1.bf16.msra.mxu0 %v335
        %355 = vmatprep.subr.bf16.mxu0 0
        %356 = vmatpush1.bf16.msra.mxu0 %v334
        %357 = vmatprep.subr.bf16.mxu0 0
        %358 = vmatpush1.bf16.msra.mxu0 %v333
        %359 = vmatprep.subr.bf16.mxu0 0
        %360 = vmatpush1.bf16.msra.mxu0 %v332
        %361 = vmatprep.subr.bf16.mxu0 0
        %362 = vmatpush1.bf16.msra.mxu0 %v331
        %363 = vmatprep.subr.bf16.mxu0 0
        %364 = vmatpush2.bf16.msra.mxu0 0
        %365 = vmatprep.subr.bf16.mxu0 0
        %366 = vmatpush2.bf16.msra.mxu0 0
        %367 = vmatprep.subr.bf16.mxu0 0
        %368 = vmatpush2.bf16.msra.mxu0 0
        %369 = vmatprep.subr.bf16.mxu0 0
        %370 = vmatpush2.bf16.msra.mxu0 0
        %371 = vmatprep.subr.bf16.mxu0 0
        %372 = vmatpush2.bf16.msra.mxu0 0
        %373 = vmatprep.subr.bf16.mxu0 0
        %374 = vmatpush2.bf16.msra.mxu0 0
        %375 = vmatprep.subr.bf16.mxu0 0
        %376 = vmatpush2.bf16.msra.mxu0 0
        %377 = vmatprep.subr.bf16.mxu0 0
        %378 = vmatpush2.bf16.msra.mxu0 0
        %379 = vmatprep.mubr.bf16.mxu0 0
        %380 = vmatmul.mubr.bf16.gmra.mxu0 %v275
        %v381 = vpop.f32.mrf.mxu0
        %v382 = vadd.f32 %v297, %v381
        %v383 = vpop.f32.mrf.mxu0
        %v384 = vpop.f32.mrf.mxu0
        %v385 = vpop.f32.mrf.mxu0
        %386 = vdwg.mxu0
        %v387 = vmul.f32 %v382, 0.5
        %v388 = vmul.f32 %v382, 0.70710677
        %v389 = verf.f32.pop %v388
        %v390 = vadd.f32 %v389, 1.0
        %v391 = vmul.f32 %v387, %v390
        %vm392 = vcmask 523264
        %v393 = vsel %vm392, %v391, 0.0
        %394 = vadd.xlane.f32.xlu0 %v393
        %v395 = vpop.xlane.xlu0 %394
        %v396 = vrcp.pop 64.0
        %v397 = vmul.f32 %v395, %v396
        %v398 = vsub.f32 %v391, %v397
        %v399 = vmul.f32 %v398, %v398
        %v400 = vsel %vm392, %v399, 0.0
        %401 = vadd.xlane.f32.xlu0 %v400
        %v402 = vpop.xlane.xlu0 %401
        %v403 = vmul.f32 %v402, %v396
        %v404 = vadd.f32 %v403, 1e-05
        %v405 = vrsqrt.pop %v404
        %v406 = vmul.f32 %v398, %v405
        %v407 = vld [vmem:[%s3] sm:$0x1]
        %v409 = vlaneseq
        %v410 = vshrl.u32 %v409, 7
        %v411 = vsub.s32 0, %v410
        %v412 = vrot.slane %v407, %v411
        %v414 = vmul.f32 %v406, %v412
        %v415 = vld [vmem:[%s4] sm:$0x1]
        %v417 = vlaneseq
        %v418 = vshrl.u32 %v417, 7
        %v419 = vsub.s32 0, %v418
        %v420 = vrot.slane %v415, %v419
        %v422 = vadd.f32 %v414, %v420
        %v423 = vpack.c.bf16 %v422, %v422
        %v424 = vld [vmem:[%s5] sm:$0xf]
        %v425 = vld [vmem:[%s5 + $0x4] sm:$0xf]
        %v426 = vld [vmem:[%s5 + $0x8] sm:$0xf]
        %v427 = vld [vmem:[%s5 + $0xc] sm:$0xf]
        %v428 = vld [vmem:[%s5 + $0x10] sm:$0xf]
        %v429 = vld [vmem:[%s5 + $0x14] sm:$0xf]
        %v430 = vld [vmem:[%s5 + $0x18] sm:$0xf]
        %v431 = vld [vmem:[%s5 + $0x1c] sm:$0xf]
        %v432 = vld [vmem:[%s6] sm:$0x1]
        %v434 = vlaneseq
        %v435 = vshrl.u32 %v434, 7
        %v436 = vsub.s32 0, %v435
        %v437 = vrot.slane %v432, %v436
        %v447 = vunpack.c.l.b16 %v424
        %v448 = vunpack.c.l.b16 %v425
        %v449 = vunpack.c.l.b16 %v426
        %v450 = vunpack.c.l.b16 %v427
        %v451 = vunpack.c.l.b16 %v428
        %v452 = vunpack.c.l.b16 %v429
        %v453 = vunpack.c.l.b16 %v430
        %v454 = vunpack.c.l.b16 %v431
        %v455 = vpack.c.b16 %v448, %v447
        %v456 = vpack.c.b16 %v450, %v449
        %v457 = vpack.c.b16 %v452, %v451
        %v458 = vpack.c.b16 %v454, %v453
        %v464 = vsel %vm392, %v423, 0
        %466 = vmatprep.subr.bf16.mxu0 0
        %467 = vmatpush1.bf16.msra.mxu0 0
        %468 = vmatprep.subr.bf16.mxu0 0
        %469 = vmatpush1.bf16.msra.mxu0 0
        %470 = vmatprep.subr.bf16.mxu0 0
        %471 = vmatpush1.bf16.msra.mxu0 0
        %472 = vmatprep.subr.bf16.mxu0 0
        %473 = vmatpush1.bf16.msra.mxu0 0
        %474 = vmatprep.subr.bf16.mxu0 0
        %475 = vmatpush1.bf16.msra.mxu0 %v458
        %476 = vmatprep.subr.bf16.mxu0 0
        %477 = vmatpush1.bf16.msra.mxu0 %v457
        %478 = vmatprep.subr.bf16.mxu0 0
        %479 = vmatpush1.bf16.msra.mxu0 %v456
        %480 = vmatprep.subr.bf16.mxu0 0
        %481 = vmatpush1.bf16.msra.mxu0 %v455
        %482 = vmatprep.subr.bf16.mxu0 0
        %483 = vmatpush2.bf16.msra.mxu0 0
        %484 = vmatprep.subr.bf16.mxu0 0
        %485 = vmatpush2.bf16.msra.mxu0 0
        %486 = vmatprep.subr.bf16.mxu0 0
        %487 = vmatpush2.bf16.msra.mxu0 0
        %488 = vmatprep.subr.bf16.mxu0 0
        %489 = vmatpush2.bf16.msra.mxu0 0
        %490 = vmatprep.subr.bf16.mxu0 0
        %491 = vmatpush2.bf16.msra.mxu0 0
        %492 = vmatprep.subr.bf16.mxu0 0
        %493 = vmatpush2.bf16.msra.mxu0 0
        %494 = vmatprep.subr.bf16.mxu0 0
        %495 = vmatpush2.bf16.msra.mxu0 0
        %496 = vmatprep.subr.bf16.mxu0 0
        %497 = vmatpush2.bf16.msra.mxu0 0
        %498 = vmatprep.mubr.bf16.mxu0 0
        %499 = vmatmul.mubr.bf16.gmra.mxu0 %v464
        %v500 = vpop.f32.mrf.mxu0
        %v501 = vadd.f32 %v437, %v500
        %v502 = vpop.f32.mrf.mxu0
        %v503 = vpop.f32.mrf.mxu0
        %v504 = vpop.f32.mrf.mxu0
        %505 = vdwg.mxu0
        %v506 = vxor.u32 %v501, 2147483648
        %v507 = vmul.f32 %v506, 1.442695
        %v508 = vpow.pop %v507
        %v509 = vadd.f32 %v508, 1.0
        %v510 = vrcp.pop %v509
        %v511 = vmul.f32 1.0, %v510
        %512 = vst [vmem:[%s269] sm:$0xff] %v511
        %s513 = sand.u32 %s181, 1
        %s514 = scalar_lea.sflag [#allocation3], %s513
        %s515 = sand.u32 %s181, 1
        %s516 = smul.addr %s515, 8
        %s517 = scalar_lea.vmem [#allocation2], %s516
        // Predicated region
        $region49: #{tpu_custom_call.1} parent=47 // pred_check
          %p518 = pneg %p191
        $region50: #{tpu_custom_call.1} parent=47 // pred_check_branch
          %520 = sbr.rel (%p518) target = $region52
        $region51: #{tpu_custom_call.1} parent=47 // pred_region
          %s522 = ssub.s32 128, 128
          %523 = vsyncadd %s514, %s522
          %s524 = smul.addr %s21, 128
          %s525 = scalar_lea.hbm %s7, %s524
          %s527 = sshll.u32 %s517, 4
          %s528 = int_to_ptr.vmem [resolvable:$true] %s527
          %530 = dma.vmem_to_hbm [thread:$0]  %s528, 128, %s525, %s514
        $region52: #{tpu_custom_call.1} parent=47 // pred_fallthru
          _
      $region48: #{tpu_custom_call.1} parent=5 // pred_fallthru
        _
      %p531 = scmp.le.s32.totalorder 2, %s16
      // Predicated region
      $region53: #{tpu_custom_call.1} parent=5 // pred_check
        %p532 = pneg %p531
      $region54: #{tpu_custom_call.1} parent=5 // pred_check_branch
        %534 = sbr.rel (%p532) target = $region56
      $region55: #{tpu_custom_call.1} parent=5 // pred_region
        %s535 = ssub.s32 %s16, 2
        // Predicated region
        $region57: #{tpu_custom_call.1} parent=55 // pred_check
          %p536 = pneg %p197
        $region58: #{tpu_custom_call.1} parent=55 // pred_check_branch
          %538 = sbr.rel (%p536) target = $region60
        $region59: #{tpu_custom_call.1} parent=55 // pred_region
          %s539 = sand.u32 %s182, 1
          %s540 = scalar_lea.sflag [#allocation3], %s539
          %s541 = sand.u32 %s182, 1
          %s542 = smul.addr %s541, 8
          %s543 = scalar_lea.vmem [#allocation2], %s542
          %544 = dma.done %s540, 128
        $region60: #{tpu_custom_call.1} parent=55 // pred_fallthru
          _
      $region56: #{tpu_custom_call.1} parent=5 // pred_fallthru
        _
    $region6: #{tpu_custom_call.1} parent=1 // loop_footer
      %s20 = sadd.s32 1, %s16
    $region7: #{tpu_custom_call.1} parent=1 // loop_footer_branch
      %15 = sbr.rel target = $region3
    $region8: #{tpu_custom_call.1} parent=1 // loop_exit
      _
    %545 = vsyncpa [#allocation3], 1
    %s546 = scalar_lea.sflag [#allocation3], 1
    %547 = vsyncpa %s546, 1

</llo_original>
